<compile_context>
chip_gen: v5e
topology: v5e:2x2
jax: 0.10.0
libtpu: 0.0.40
codegen_flags: <defaults>
</compile_context>

<pallas_src>
from functools import partial

import jax
import jax.numpy as jnp
from jax import lax
from jax.experimental import pallas as pl
from jax.experimental.pallas import tpu as pltpu


def _round_up(n, m):
    return ((n + m - 1) // m) * m


# --------------------------------------------------------------------------
# Kernel: one grid step == Tt ESN timesteps (weights + carry stay in VMEM).
# --------------------------------------------------------------------------
def _esn_seq_kernel(w_ref, init_ref, pre_in_ref, out_ref, state_ref, *,
                    leaky_rate, tt):
    # w_ref:      (R_pad, R_pad)  zero-padded W^T, VMEM-resident across grid
    # init_ref:   (B, R_pad)      initial state (zero padded), VMEM-resident
    # pre_in_ref: (Tt, B, R_pad)  precomputed x_t @ W_in^T for this time block
    # out_ref:    (Tt, B, R_pad)  per-step output states
    # state_ref:  (B, R_pad)      persistent recurrent carry (f32)
    tb = pl.program_id(0)

    @pl.when(tb == 0)
    def _():
        state_ref[...] = init_ref[...]

    def step(i, carry):
        prev = state_ref[...]                                  # (B, R_pad)
        # Recurrent mat-vec only; the input projection was hoisted outside.
        pre = pre_in_ref[i] + jnp.dot(prev, w_ref[...],
                                      preferred_element_type=jnp.float32)
        updated = (1.0 - leaky_rate) * prev + leaky_rate * jnp.tanh(pre)

        # ||u|| clamp(1e-6) division done as rsqrt(max(ssq, 1e-12)) * u.
        # Padded lanes/rows are exactly zero, so the norm is unaffected.
        ssq = jnp.sum(updated * updated, axis=-1, keepdims=True)   # (B, 1)
        inv = lax.rsqrt(jnp.maximum(ssq, 1e-12))
        state = updated * inv

        state_ref[...] = state        # carry the recurrent state
        out_ref[i] = state            # lane-dense per-step output
        return carry

    lax.fori_loop(0, tt, step, 0, unroll=True)


# --------------------------------------------------------------------------
# Padded sequence forward (single kernel launch over the whole sequence).
# --------------------------------------------------------------------------
@partial(jax.jit, static_argnames=("leaky_rate", "tt"))
def _esn_forward_padded(w_t_pad, init_pad, pre_in_pad, *, leaky_rate, tt):
    r_pad = w_t_pad.shape[0]
    t_pad, b_pad, _ = pre_in_pad.shape
    assert t_pad % tt == 0

    kernel = partial(_esn_seq_kernel, leaky_rate=leaky_rate, tt=tt)

    return pl.pallas_call(
        kernel,
        out_shape=jax.ShapeDtypeStruct((t_pad, b_pad, r_pad), jnp.float32),
        grid_spec=pltpu.PrefetchScalarGridSpec(
            num_scalar_prefetch=0,
            grid=(t_pad // tt,),
            in_specs=[
                # Constant block index -> DMA'd once, resident across all steps.
                pl.BlockSpec((r_pad, r_pad), lambda t: (0, 0)),     # W^T
                pl.BlockSpec((b_pad, r_pad), lambda t: (0, 0)),     # init state
                # Per-time-block input projection, pipelined over the grid.
                pl.BlockSpec((tt, b_pad, r_pad), lambda t: (t, 0, 0)),
            ],
            out_specs=pl.BlockSpec((tt, b_pad, r_pad), lambda t: (t, 0, 0)),
            scratch_shapes=[pltpu.VMEM((b_pad, r_pad), jnp.float32)],
        ),
        compiler_params=pltpu.CompilerParams(
            dimension_semantics=("arbitrary",),     # recurrence is sequential
            vmem_limit_bytes=32 * 1024 * 1024,
        ),
    )(w_t_pad, init_pad, pre_in_pad)


# --------------------------------------------------------------------------
# Public wrappers.
# --------------------------------------------------------------------------
def esn_forward_sequence(W_in, W, x_seq, init_state, leaky_rate, *, tt=8):
    """x_seq: (T, B, D), init_state: (B, R)  ->  states (T, B, R)."""
    R, D = W_in.shape
    T, B, _ = x_seq.shape
    r_pad = _round_up(R, 128)
    b_pad = _round_up(B, 8)
    t_pad = _round_up(T, tt)

    # Resident recurrent weight: zero-padded W^T (r_pad, r_pad), f32.
    w_t_pad = jnp.zeros((r_pad, r_pad), jnp.float32).at[:R, :R].set(
        W.T.astype(jnp.float32))

    # Hoisted input projection: one large parallel matmul, outside the kernel.
    # No zero-padding of the raw D dimension anywhere.
    pre_in = jnp.einsum("tbd,rd->tbr", x_seq.astype(jnp.float32),
                        W_in.astype(jnp.float32))               # (T, B, R)
    pre_in_pad = jnp.zeros((t_pad, b_pad, r_pad), jnp.float32).at[
        :T, :B, :R].set(pre_in)

    init_pad = jnp.zeros((b_pad, r_pad), jnp.float32).at[:B, :R].set(
        init_state.astype(jnp.float32))

    out = _esn_forward_padded(w_t_pad, init_pad, pre_in_pad,
                              leaky_rate=float(leaky_rate), tt=int(tt))
    return out[:T, :B, :R]


def esn_step(W_in, W, x, state, leaky_rate):
    """Exact single-step module forward: x (D,), state (R,) -> new state (R,)."""
    R, D = W_in.shape
    out = esn_forward_sequence(W_in, W, x.reshape(1, 1, D),
                               state.reshape(1, R), leaky_rate)
    return out[0, 0]


# --------------------------------------------------------------------------
# Plain-JAX replica of the PyTorch __init__ (host-side, one time).
# --------------------------------------------------------------------------
def init_esn_params(key, input_dim, reservoir_size,
                    spectral_radius=0.9, sparsity=0.5):
    k1, k2, k3, k4 = jax.random.split(key, 4)
    W_in = (jax.random.uniform(k1, (reservoir_size, input_dim)) - 0.5) * 2.0 / input_dim

    W = jax.random.uniform(k2, (reservoir_size, reservoir_size)) - 0.5
    mask = jax.random.uniform(k3, (reservoir_size, reservoir_size)) > sparsity
    W = jnp.where(mask, 0.0, W)

    # Reproduces the reference power-iteration verbatim (max_eig is the norm of
    # an already-normalized vector, matching the PyTorch module's behaviour).
    v = jax.random.uniform(k4, (reservoir_size, 1))
    for _ in range(50):
        v = W @ v
        v = v / jnp.linalg.norm(v)
    max_eig = jnp.linalg.norm(v)
    W = W * (spectral_radius / max_eig)

    state = jnp.zeros((reservoir_size,), dtype=jnp.float32)
    return W_in.astype(jnp.float32), W.astype(jnp.float32), state


# --------------------------------------------------------------------------
# Pure-JAX references for the self-test.
# --------------------------------------------------------------------------
def esn_reference_step(W_in, W, x, state, leaky_rate):
    pre = W_in @ x + W @ state
    updated = (1.0 - leaky_rate) * state + leaky_rate * jnp.tanh(pre)
    return updated / jnp.maximum(jnp.linalg.norm(updated), 1e-6)


def esn_reference_sequence(W_in, W, x_seq, init_state, leaky_rate):
    T = x_seq.shape[0]
    s = init_state
    states = []
    for t in range(T):
        pre = x_seq[t] @ W_in.T + s @ W.T
        upd = (1.0 - leaky_rate) * s + leaky_rate * jnp.tanh(pre)
        nrm = jnp.maximum(jnp.linalg.norm(upd, axis=-1, keepdims=True), 1e-6)
        s = upd / nrm
        states.append(s)
    return jnp.stack(states)


if __name__ == "__main__":
    input_dim = 16
    reservoir_size = 32
    leaky_rate = 0.2
    T = 16         # sequence length (time loop + blocking live inside the kernel)
    B = 8          # batch of independent reservoir streams (fills sublanes)

    key = jax.random.PRNGKey(0)
    pkey, xkey, skey = jax.random.split(key, 3)
    W_in, W, state0 = init_esn_params(pkey, input_dim, reservoir_size)

    # Batched multi-timestep test (two time blocks of Tt=8).
    x_seq = jax.random.normal(xkey, (T, B, input_dim), dtype=jnp.float32)
    init_state = jnp.zeros((B, reservoir_size), dtype=jnp.float32)

    states = esn_forward_sequence(W_in, W, x_seq, init_state, leaky_rate)
    jax.block_until_ready(states)
    ref_states = esn_reference_sequence(W_in, W, x_seq, init_state, leaky_rate)
    assert states.shape == (T, B, reservoir_size)
    assert jnp.allclose(states, ref_states, atol=1e-5, rtol=1e-5)

    # Exact single-step module semantics (x: (D,), state: (R,)).
    x_one = jax.random.normal(skey, (input_dim,), dtype=jnp.float32)
    new_state = esn_step(W_in, W, x_one, state0, leaky_rate)
    jax.block_until_ready(new_state)
    ref_one = esn_reference_step(W_in, W, x_one, state0, leaky_rate)
    assert new_state.shape == (reservoir_size,)
    assert jnp.allclose(new_state, ref_one, atol=1e-5, rtol=1e-5)

    # Second step to exercise recurrent feedback through the kernel.
    new_state2 = esn_step(W_in, W, x_one, new_state, leaky_rate)
    jax.block_until_ready(new_state2)
    ref_two = esn_reference_step(W_in, W, x_one, ref_one, leaky_rate)
    assert jnp.allclose(new_state2, ref_two, atol=1e-5, rtol=1e-5)

    print("KERNEL_OK")
</pallas_src>

<mosaic_0001>
module attributes {stable_mosaic.version = 11 : i64} {
  func.func @_esn_seq_kernel(%arg0: i32, %arg1: memref<128x128xf32, #tpu.memory_space<vmem>>, %arg2: memref<8x128xf32, #tpu.memory_space<vmem>>, %arg3: memref<8x8x128xf32, #tpu.memory_space<vmem>>, %arg4: memref<8x8x128xf32, #tpu.memory_space<vmem>>, %arg5: memref<8x128xf32, #tpu.memory_space<vmem>>) attributes {dimension_semantics = [#tpu.dimension_semantics<arbitrary>], iteration_bounds = array<i64: 2>, scalar_prefetch = 0 : i64, scratch_operands = 1 : i64, tpu.core_type = #tpu.core_type<tc>, window_params = [{pipeline_mode = #tpu.pipeline_mode<synchronous>, transform_indices = @transform_0, window_bounds = array<i64: 128, 128>}, {pipeline_mode = #tpu.pipeline_mode<synchronous>, transform_indices = @transform_1, window_bounds = array<i64: 8, 128>}, {transform_indices = @transform_2, window_bounds = array<i64: 8, 8, 128>}, {transform_indices = @transform_3, window_bounds = array<i64: 8, 8, 128>}]} {
    %c0_i32 = arith.constant 0 : i32
    %0 = arith.cmpi eq, %arg0, %c0_i32 : i32
    %1 = arith.extui %0 : i1 to i32
    %c0_i32_0 = arith.constant 0 : i32
    %2 = arith.cmpi ne, %1, %c0_i32_0 : i32
    scf.if %2 {
      %c0_120 = arith.constant 0 : index
      %c0_121 = arith.constant 0 : index
      %211 = vector.load %arg2[%c0_120, %c0_121] : memref<8x128xf32, #tpu.memory_space<vmem>>, vector<8x128xf32>
      %c0_122 = arith.constant 0 : index
      %c0_123 = arith.constant 0 : index
      %212 = vector.load %arg5[%c0_122, %c0_123] : memref<8x128xf32, #tpu.memory_space<vmem>>, vector<8x128xf32>
      tpu.vector_store %arg5[%c0_122, %c0_123], %211 {strides = array<i32>} : memref<8x128xf32, #tpu.memory_space<vmem>>, vector<8x128xf32>,
    } else {
    }
    %c0_i32_1 = arith.constant 0 : i32
    %c0 = arith.constant 0 : index
    %c0_2 = arith.constant 0 : index
    %3 = vector.load %arg5[%c0, %c0_2] : memref<8x128xf32, #tpu.memory_space<vmem>>, vector<8x128xf32>
    %4 = arith.index_cast %c0_i32_1 : i32 to index
    %c0_3 = arith.constant 0 : index
    %c0_4 = arith.constant 0 : index
    %5 = vector.load %arg3[%4, %c0_3, %c0_4] : memref<8x8x128xf32, #tpu.memory_space<vmem>>, vector<1x8x128xf32>
    %6 = vector.shape_cast %5 : vector<1x8x128xf32> to vector<8x128xf32>
    %c0_5 = arith.constant 0 : index
    %c0_6 = arith.constant 0 : index
    %7 = vector.load %arg1[%c0_5, %c0_6] : memref<128x128xf32, #tpu.memory_space<vmem>>, vector<128x128xf32>
    %cst = arith.constant dense<0.000000e+00> : vector<8x128xf32>
    %8 = tpu.matmul %3, %7, %cst {dimension_numbers = #tpu.dot_dimension_numbers<[1], [0], [0], [1], [0, 0, 1, 1], [], []>} : vector<8x128xf32>, vector<128x128xf32>, vector<8x128xf32> -> vector<8x128xf32>
    %9 = arith.addf %6, %8 : vector<8x128xf32>
    %cst_7 = arith.constant 8.000000e-01 : f32
    %10 = vector.broadcast %cst_7 : f32 to vector<8x128xf32>
    %11 = arith.mulf %10, %3 : vector<8x128xf32>
    %12 = math.tanh %9 : vector<8x128xf32>
    %cst_8 = arith.constant 2.000000e-01 : f32
    %13 = vector.broadcast %cst_8 : f32 to vector<8x128xf32>
    %14 = arith.mulf %13, %12 : vector<8x128xf32>
    %15 = arith.addf %11, %14 : vector<8x128xf32>
    %16 = arith.mulf %15, %15 : vector<8x128xf32>
    %cst_9 = arith.constant dense<0.000000e+00> : vector<8xf32>
    %17 = vector.multi_reduction <add>, %16, %cst_9 [1] : vector<8x128xf32> to vector<8xf32>
    %18 = vector.shape_cast %17 : vector<8xf32> to vector<8x1xf32>
    %cst_10 = arith.constant 9.99999996E-13 : f32
    %19 = vector.broadcast %cst_10 : f32 to vector<8x1xf32>
    %20 = arith.maximumf %18, %19 : vector<8x1xf32>
    %21 = math.rsqrt %20 : vector<8x1xf32>
    %22 = vector.broadcast %21 : vector<8x1xf32> to vector<8x128xf32>
    %23 = arith.mulf %15, %22 : vector<8x128xf32>
    %c0_11 = arith.constant 0 : index
    %c0_12 = arith.constant 0 : index
    %24 = vector.load %arg5[%c0_11, %c0_12] : memref<8x128xf32, #tpu.memory_space<vmem>>, vector<8x128xf32>
    tpu.vector_store %arg5[%c0_11, %c0_12], %23 {strides = array<i32>} : memref<8x128xf32, #tpu.memory_space<vmem>>, vector<8x128xf32>,
    %25 = arith.index_cast %c0_i32_1 : i32 to index
    %c0_13 = arith.constant 0 : index
    %c0_14 = arith.constant 0 : index
    %26 = vector.load %arg4[%25, %c0_13, %c0_14] : memref<8x8x128xf32, #tpu.memory_space<vmem>>, vector<1x8x128xf32>
    %27 = vector.shape_cast %26 : vector<1x8x128xf32> to vector<8x128xf32>
    %28 = vector.shape_cast %23 : vector<8x128xf32> to vector<1x8x128xf32>
    tpu.vector_store %arg4[%25, %c0_13, %c0_14], %28 {strides = array<i32>} : memref<8x8x128xf32, #tpu.memory_space<vmem>>, vector<1x8x128xf32>,
    %c1_i32 = arith.constant 1 : i32
    %c0_15 = arith.constant 0 : index
    %c0_16 = arith.constant 0 : index
    %29 = vector.load %arg5[%c0_15, %c0_16] : memref<8x128xf32, #tpu.memory_space<vmem>>, vector<8x128xf32>
    %30 = arith.index_cast %c1_i32 : i32 to index
    %c0_17 = arith.constant 0 : index
    %c0_18 = arith.constant 0 : index
    %31 = vector.load %arg3[%30, %c0_17, %c0_18] : memref<8x8x128xf32, #tpu.memory_space<vmem>>, vector<1x8x128xf32>
    %32 = vector.shape_cast %31 : vector<1x8x128xf32> to vector<8x128xf32>
    %c0_19 = arith.constant 0 : index
    %c0_20 = arith.constant 0 : index
    %33 = vector.load %arg1[%c0_19, %c0_20] : memref<128x128xf32, #tpu.memory_space<vmem>>, vector<128x128xf32>
    %cst_21 = arith.constant dense<0.000000e+00> : vector<8x128xf32>
    %34 = tpu.matmul %29, %33, %cst_21 {dimension_numbers = #tpu.dot_dimension_numbers<[1], [0], [0], [1], [0, 0, 1, 1], [], []>} : vector<8x128xf32>, vector<128x128xf32>, vector<8x128xf32> -> vector<8x128xf32>
    %35 = arith.addf %32, %34 : vector<8x128xf32>
    %cst_22 = arith.constant 8.000000e-01 : f32
    %36 = vector.broadcast %cst_22 : f32 to vector<8x128xf32>
    %37 = arith.mulf %36, %29 : vector<8x128xf32>
    %38 = math.tanh %35 : vector<8x128xf32>
    %cst_23 = arith.constant 2.000000e-01 : f32
    %39 = vector.broadcast %cst_23 : f32 to vector<8x128xf32>
    %40 = arith.mulf %39, %38 : vector<8x128xf32>
    %41 = arith.addf %37, %40 : vector<8x128xf32>
    %42 = arith.mulf %41, %41 : vector<8x128xf32>
    %cst_24 = arith.constant dense<0.000000e+00> : vector<8xf32>
    %43 = vector.multi_reduction <add>, %42, %cst_24 [1] : vector<8x128xf32> to vector<8xf32>
    %44 = vector.shape_cast %43 : vector<8xf32> to vector<8x1xf32>
    %cst_25 = arith.constant 9.99999996E-13 : f32
    %45 = vector.broadcast %cst_25 : f32 to vector<8x1xf32>
    %46 = arith.maximumf %44, %45 : vector<8x1xf32>
    %47 = math.rsqrt %46 : vector<8x1xf32>
    %48 = vector.broadcast %47 : vector<8x1xf32> to vector<8x128xf32>
    %49 = arith.mulf %41, %48 : vector<8x128xf32>
    %c0_26 = arith.constant 0 : index
    %c0_27 = arith.constant 0 : index
    %50 = vector.load %arg5[%c0_26, %c0_27] : memref<8x128xf32, #tpu.memory_space<vmem>>, vector<8x128xf32>
    tpu.vector_store %arg5[%c0_26, %c0_27], %49 {strides = array<i32>} : memref<8x128xf32, #tpu.memory_space<vmem>>, vector<8x128xf32>,
    %51 = arith.index_cast %c1_i32 : i32 to index
    %c0_28 = arith.constant 0 : index
    %c0_29 = arith.constant 0 : index
    %52 = vector.load %arg4[%51, %c0_28, %c0_29] : memref<8x8x128xf32, #tpu.memory_space<vmem>>, vector<1x8x128xf32>
    %53 = vector.shape_cast %52 : vector<1x8x128xf32> to vector<8x128xf32>
    %54 = vector.shape_cast %49 : vector<8x128xf32> to vector<1x8x128xf32>
    tpu.vector_store %arg4[%51, %c0_28, %c0_29], %54 {strides = array<i32>} : memref<8x8x128xf32, #tpu.memory_space<vmem>>, vector<1x8x128xf32>,
    %c2_i32 = arith.constant 2 : i32
    %c0_30 = arith.constant 0 : index
    %c0_31 = arith.constant 0 : index
    %55 = vector.load %arg5[%c0_30, %c0_31] : memref<8x128xf32, #tpu.memory_space<vmem>>, vector<8x128xf32>
    %56 = arith.index_cast %c2_i32 : i32 to index
    %c0_32 = arith.constant 0 : index
    %c0_33 = arith.constant 0 : index
    %57 = vector.load %arg3[%56, %c0_32, %c0_33] : memref<8x8x128xf32, #tpu.memory_space<vmem>>, vector<1x8x128xf32>
    %58 = vector.shape_cast %57 : vector<1x8x128xf32> to vector<8x128xf32>
    %c0_34 = arith.constant 0 : index
    %c0_35 = arith.constant 0 : index
    %59 = vector.load %arg1[%c0_34, %c0_35] : memref<128x128xf32, #tpu.memory_space<vmem>>, vector<128x128xf32>
    %cst_36 = arith.constant dense<0.000000e+00> : vector<8x128xf32>
    %60 = tpu.matmul %55, %59, %cst_36 {dimension_numbers = #tpu.dot_dimension_numbers<[1], [0], [0], [1], [0, 0, 1, 1], [], []>} : vector<8x128xf32>, vector<128x128xf32>, vector<8x128xf32> -> vector<8x128xf32>
    %61 = arith.addf %58, %60 : vector<8x128xf32>
    %cst_37 = arith.constant 8.000000e-01 : f32
    %62 = vector.broadcast %cst_37 : f32 to vector<8x128xf32>
    %63 = arith.mulf %62, %55 : vector<8x128xf32>
    %64 = math.tanh %61 : vector<8x128xf32>
    %cst_38 = arith.constant 2.000000e-01 : f32
    %65 = vector.broadcast %cst_38 : f32 to vector<8x128xf32>
    %66 = arith.mulf %65, %64 : vector<8x128xf32>
    %67 = arith.addf %63, %66 : vector<8x128xf32>
    %68 = arith.mulf %67, %67 : vector<8x128xf32>
    %cst_39 = arith.constant dense<0.000000e+00> : vector<8xf32>
    %69 = vector.multi_reduction <add>, %68, %cst_39 [1] : vector<8x128xf32> to vector<8xf32>
    %70 = vector.shape_cast %69 : vector<8xf32> to vector<8x1xf32>
    %cst_40 = arith.constant 9.99999996E-13 : f32
    %71 = vector.broadcast %cst_40 : f32 to vector<8x1xf32>
    %72 = arith.maximumf %70, %71 : vector<8x1xf32>
    %73 = math.rsqrt %72 : vector<8x1xf32>
    %74 = vector.broadcast %73 : vector<8x1xf32> to vector<8x128xf32>
    %75 = arith.mulf %67, %74 : vector<8x128xf32>
    %c0_41 = arith.constant 0 : index
    %c0_42 = arith.constant 0 : index
    %76 = vector.load %arg5[%c0_41, %c0_42] : memref<8x128xf32, #tpu.memory_space<vmem>>, vector<8x128xf32>
    tpu.vector_store %arg5[%c0_41, %c0_42], %75 {strides = array<i32>} : memref<8x128xf32, #tpu.memory_space<vmem>>, vector<8x128xf32>,
    %77 = arith.index_cast %c2_i32 : i32 to index
    %c0_43 = arith.constant 0 : index
    %c0_44 = arith.constant 0 : index
    %78 = vector.load %arg4[%77, %c0_43, %c0_44] : memref<8x8x128xf32, #tpu.memory_space<vmem>>, vector<1x8x128xf32>
    %79 = vector.shape_cast %78 : vector<1x8x128xf32> to vector<8x128xf32>
    %80 = vector.shape_cast %75 : vector<8x128xf32> to vector<1x8x128xf32>
    tpu.vector_store %arg4[%77, %c0_43, %c0_44], %80 {strides = array<i32>} : memref<8x8x128xf32, #tpu.memory_space<vmem>>, vector<1x8x128xf32>,
    %c3_i32 = arith.constant 3 : i32
    %c0_45 = arith.constant 0 : index
    %c0_46 = arith.constant 0 : index
    %81 = vector.load %arg5[%c0_45, %c0_46] : memref<8x128xf32, #tpu.memory_space<vmem>>, vector<8x128xf32>
    %82 = arith.index_cast %c3_i32 : i32 to index
    %c0_47 = arith.constant 0 : index
    %c0_48 = arith.constant 0 : index
    %83 = vector.load %arg3[%82, %c0_47, %c0_48] : memref<8x8x128xf32, #tpu.memory_space<vmem>>, vector<1x8x128xf32>
    %84 = vector.shape_cast %83 : vector<1x8x128xf32> to vector<8x128xf32>
    %c0_49 = arith.constant 0 : index
    %c0_50 = arith.constant 0 : index
    %85 = vector.load %arg1[%c0_49, %c0_50] : memref<128x128xf32, #tpu.memory_space<vmem>>, vector<128x128xf32>
    %cst_51 = arith.constant dense<0.000000e+00> : vector<8x128xf32>
    %86 = tpu.matmul %81, %85, %cst_51 {dimension_numbers = #tpu.dot_dimension_numbers<[1], [0], [0], [1], [0, 0, 1, 1], [], []>} : vector<8x128xf32>, vector<128x128xf32>, vector<8x128xf32> -> vector<8x128xf32>
    %87 = arith.addf %84, %86 : vector<8x128xf32>
    %cst_52 = arith.constant 8.000000e-01 : f32
    %88 = vector.broadcast %cst_52 : f32 to vector<8x128xf32>
    %89 = arith.mulf %88, %81 : vector<8x128xf32>
    %90 = math.tanh %87 : vector<8x128xf32>
    %cst_53 = arith.constant 2.000000e-01 : f32
    %91 = vector.broadcast %cst_53 : f32 to vector<8x128xf32>
    %92 = arith.mulf %91, %90 : vector<8x128xf32>
    %93 = arith.addf %89, %92 : vector<8x128xf32>
    %94 = arith.mulf %93, %93 : vector<8x128xf32>
    %cst_54 = arith.constant dense<0.000000e+00> : vector<8xf32>
    %95 = vector.multi_reduction <add>, %94, %cst_54 [1] : vector<8x128xf32> to vector<8xf32>
    %96 = vector.shape_cast %95 : vector<8xf32> to vector<8x1xf32>
    %cst_55 = arith.constant 9.99999996E-13 : f32
    %97 = vector.broadcast %cst_55 : f32 to vector<8x1xf32>
    %98 = arith.maximumf %96, %97 : vector<8x1xf32>
    %99 = math.rsqrt %98 : vector<8x1xf32>
    %100 = vector.broadcast %99 : vector<8x1xf32> to vector<8x128xf32>
    %101 = arith.mulf %93, %100 : vector<8x128xf32>
    %c0_56 = arith.constant 0 : index
    %c0_57 = arith.constant 0 : index
    %102 = vector.load %arg5[%c0_56, %c0_57] : memref<8x128xf32, #tpu.memory_space<vmem>>, vector<8x128xf32>
    tpu.vector_store %arg5[%c0_56, %c0_57], %101 {strides = array<i32>} : memref<8x128xf32, #tpu.memory_space<vmem>>, vector<8x128xf32>,
    %103 = arith.index_cast %c3_i32 : i32 to index
    %c0_58 = arith.constant 0 : index
    %c0_59 = arith.constant 0 : index
    %104 = vector.load %arg4[%103, %c0_58, %c0_59] : memref<8x8x128xf32, #tpu.memory_space<vmem>>, vector<1x8x128xf32>
    %105 = vector.shape_cast %104 : vector<1x8x128xf32> to vector<8x128xf32>
    %106 = vector.shape_cast %101 : vector<8x128xf32> to vector<1x8x128xf32>
    tpu.vector_store %arg4[%103, %c0_58, %c0_59], %106 {strides = array<i32>} : memref<8x8x128xf32, #tpu.memory_space<vmem>>, vector<1x8x128xf32>,
    %c4_i32 = arith.constant 4 : i32
    %c0_60 = arith.constant 0 : index
    %c0_61 = arith.constant 0 : index
    %107 = vector.load %arg5[%c0_60, %c0_61] : memref<8x128xf32, #tpu.memory_space<vmem>>, vector<8x128xf32>
    %108 = arith.index_cast %c4_i32 : i32 to index
    %c0_62 = arith.constant 0 : index
    %c0_63 = arith.constant 0 : index
    %109 = vector.load %arg3[%108, %c0_62, %c0_63] : memref<8x8x128xf32, #tpu.memory_space<vmem>>, vector<1x8x128xf32>
    %110 = vector.shape_cast %109 : vector<1x8x128xf32> to vector<8x128xf32>
    %c0_64 = arith.constant 0 : index
    %c0_65 = arith.constant 0 : index
    %111 = vector.load %arg1[%c0_64, %c0_65] : memref<128x128xf32, #tpu.memory_space<vmem>>, vector<128x128xf32>
    %cst_66 = arith.constant dense<0.000000e+00> : vector<8x128xf32>
    %112 = tpu.matmul %107, %111, %cst_66 {dimension_numbers = #tpu.dot_dimension_numbers<[1], [0], [0], [1], [0, 0, 1, 1], [], []>} : vector<8x128xf32>, vector<128x128xf32>, vector<8x128xf32> -> vector<8x128xf32>
    %113 = arith.addf %110, %112 : vector<8x128xf32>
    %cst_67 = arith.constant 8.000000e-01 : f32
    %114 = vector.broadcast %cst_67 : f32 to vector<8x128xf32>
    %115 = arith.mulf %114, %107 : vector<8x128xf32>
    %116 = math.tanh %113 : vector<8x128xf32>
    %cst_68 = arith.constant 2.000000e-01 : f32
    %117 = vector.broadcast %cst_68 : f32 to vector<8x128xf32>
    %118 = arith.mulf %117, %116 : vector<8x128xf32>
    %119 = arith.addf %115, %118 : vector<8x128xf32>
    %120 = arith.mulf %119, %119 : vector<8x128xf32>
    %cst_69 = arith.constant dense<0.000000e+00> : vector<8xf32>
    %121 = vector.multi_reduction <add>, %120, %cst_69 [1] : vector<8x128xf32> to vector<8xf32>
    %122 = vector.shape_cast %121 : vector<8xf32> to vector<8x1xf32>
    %cst_70 = arith.constant 9.99999996E-13 : f32
    %123 = vector.broadcast %cst_70 : f32 to vector<8x1xf32>
    %124 = arith.maximumf %122, %123 : vector<8x1xf32>
    %125 = math.rsqrt %124 : vector<8x1xf32>
    %126 = vector.broadcast %125 : vector<8x1xf32> to vector<8x128xf32>
    %127 = arith.mulf %119, %126 : vector<8x128xf32>
    %c0_71 = arith.constant 0 : index
    %c0_72 = arith.constant 0 : index
    %128 = vector.load %arg5[%c0_71, %c0_72] : memref<8x128xf32, #tpu.memory_space<vmem>>, vector<8x128xf32>
    tpu.vector_store %arg5[%c0_71, %c0_72], %127 {strides = array<i32>} : memref<8x128xf32, #tpu.memory_space<vmem>>, vector<8x128xf32>,
    %129 = arith.index_cast %c4_i32 : i32 to index
    %c0_73 = arith.constant 0 : index
    %c0_74 = arith.constant 0 : index
    %130 = vector.load %arg4[%129, %c0_73, %c0_74] : memref<8x8x128xf32, #tpu.memory_space<vmem>>, vector<1x8x128xf32>
    %131 = vector.shape_cast %130 : vector<1x8x128xf32> to vector<8x128xf32>
    %132 = vector.shape_cast %127 : vector<8x128xf32> to vector<1x8x128xf32>
    tpu.vector_store %arg4[%129, %c0_73, %c0_74], %132 {strides = array<i32>} : memref<8x8x128xf32, #tpu.memory_space<vmem>>, vector<1x8x128xf32>,
    %c5_i32 = arith.constant 5 : i32
    %c0_75 = arith.constant 0 : index
    %c0_76 = arith.constant 0 : index
    %133 = vector.load %arg5[%c0_75, %c0_76] : memref<8x128xf32, #tpu.memory_space<vmem>>, vector<8x128xf32>
    %134 = arith.index_cast %c5_i32 : i32 to index
    %c0_77 = arith.constant 0 : index
    %c0_78 = arith.constant 0 : index
    %135 = vector.load %arg3[%134, %c0_77, %c0_78] : memref<8x8x128xf32, #tpu.memory_space<vmem>>, vector<1x8x128xf32>
    %136 = vector.shape_cast %135 : vector<1x8x128xf32> to vector<8x128xf32>
    %c0_79 = arith.constant 0 : index
    %c0_80 = arith.constant 0 : index
    %137 = vector.load %arg1[%c0_79, %c0_80] : memref<128x128xf32, #tpu.memory_space<vmem>>, vector<128x128xf32>
    %cst_81 = arith.constant dense<0.000000e+00> : vector<8x128xf32>
    %138 = tpu.matmul %133, %137, %cst_81 {dimension_numbers = #tpu.dot_dimension_numbers<[1], [0], [0], [1], [0, 0, 1, 1], [], []>} : vector<8x128xf32>, vector<128x128xf32>, vector<8x128xf32> -> vector<8x128xf32>
    %139 = arith.addf %136, %138 : vector<8x128xf32>
    %cst_82 = arith.constant 8.000000e-01 : f32
    %140 = vector.broadcast %cst_82 : f32 to vector<8x128xf32>
    %141 = arith.mulf %140, %133 : vector<8x128xf32>
    %142 = math.tanh %139 : vector<8x128xf32>
    %cst_83 = arith.constant 2.000000e-01 : f32
    %143 = vector.broadcast %cst_83 : f32 to vector<8x128xf32>
    %144 = arith.mulf %143, %142 : vector<8x128xf32>
    %145 = arith.addf %141, %144 : vector<8x128xf32>
    %146 = arith.mulf %145, %145 : vector<8x128xf32>
    %cst_84 = arith.constant dense<0.000000e+00> : vector<8xf32>
    %147 = vector.multi_reduction <add>, %146, %cst_84 [1] : vector<8x128xf32> to vector<8xf32>
    %148 = vector.shape_cast %147 : vector<8xf32> to vector<8x1xf32>
    %cst_85 = arith.constant 9.99999996E-13 : f32
    %149 = vector.broadcast %cst_85 : f32 to vector<8x1xf32>
    %150 = arith.maximumf %148, %149 : vector<8x1xf32>
    %151 = math.rsqrt %150 : vector<8x1xf32>
    %152 = vector.broadcast %151 : vector<8x1xf32> to vector<8x128xf32>
    %153 = arith.mulf %145, %152 : vector<8x128xf32>
    %c0_86 = arith.constant 0 : index
    %c0_87 = arith.constant 0 : index
    %154 = vector.load %arg5[%c0_86, %c0_87] : memref<8x128xf32, #tpu.memory_space<vmem>>, vector<8x128xf32>
    tpu.vector_store %arg5[%c0_86, %c0_87], %153 {strides = array<i32>} : memref<8x128xf32, #tpu.memory_space<vmem>>, vector<8x128xf32>,
    %155 = arith.index_cast %c5_i32 : i32 to index
    %c0_88 = arith.constant 0 : index
    %c0_89 = arith.constant 0 : index
    %156 = vector.load %arg4[%155, %c0_88, %c0_89] : memref<8x8x128xf32, #tpu.memory_space<vmem>>, vector<1x8x128xf32>
    %157 = vector.shape_cast %156 : vector<1x8x128xf32> to vector<8x128xf32>
    %158 = vector.shape_cast %153 : vector<8x128xf32> to vector<1x8x128xf32>
    tpu.vector_store %arg4[%155, %c0_88, %c0_89], %158 {strides = array<i32>} : memref<8x8x128xf32, #tpu.memory_space<vmem>>, vector<1x8x128xf32>,
    %c6_i32 = arith.constant 6 : i32
    %c0_90 = arith.constant 0 : index
    %c0_91 = arith.constant 0 : index
    %159 = vector.load %arg5[%c0_90, %c0_91] : memref<8x128xf32, #tpu.memory_space<vmem>>, vector<8x128xf32>
    %160 = arith.index_cast %c6_i32 : i32 to index
    %c0_92 = arith.constant 0 : index
    %c0_93 = arith.constant 0 : index
    %161 = vector.load %arg3[%160, %c0_92, %c0_93] : memref<8x8x128xf32, #tpu.memory_space<vmem>>, vector<1x8x128xf32>
    %162 = vector.shape_cast %161 : vector<1x8x128xf32> to vector<8x128xf32>
    %c0_94 = arith.constant 0 : index
    %c0_95 = arith.constant 0 : index
    %163 = vector.load %arg1[%c0_94, %c0_95] : memref<128x128xf32, #tpu.memory_space<vmem>>, vector<128x128xf32>
    %cst_96 = arith.constant dense<0.000000e+00> : vector<8x128xf32>
    %164 = tpu.matmul %159, %163, %cst_96 {dimension_numbers = #tpu.dot_dimension_numbers<[1], [0], [0], [1], [0, 0, 1, 1], [], []>} : vector<8x128xf32>, vector<128x128xf32>, vector<8x128xf32> -> vector<8x128xf32>
    %165 = arith.addf %162, %164 : vector<8x128xf32>
    %cst_97 = arith.constant 8.000000e-01 : f32
    %166 = vector.broadcast %cst_97 : f32 to vector<8x128xf32>
    %167 = arith.mulf %166, %159 : vector<8x128xf32>
    %168 = math.tanh %165 : vector<8x128xf32>
    %cst_98 = arith.constant 2.000000e-01 : f32
    %169 = vector.broadcast %cst_98 : f32 to vector<8x128xf32>
    %170 = arith.mulf %169, %168 : vector<8x128xf32>
    %171 = arith.addf %167, %170 : vector<8x128xf32>
    %172 = arith.mulf %171, %171 : vector<8x128xf32>
    %cst_99 = arith.constant dense<0.000000e+00> : vector<8xf32>
    %173 = vector.multi_reduction <add>, %172, %cst_99 [1] : vector<8x128xf32> to vector<8xf32>
    %174 = vector.shape_cast %173 : vector<8xf32> to vector<8x1xf32>
    %cst_100 = arith.constant 9.99999996E-13 : f32
    %175 = vector.broadcast %cst_100 : f32 to vector<8x1xf32>
    %176 = arith.maximumf %174, %175 : vector<8x1xf32>
    %177 = math.rsqrt %176 : vector<8x1xf32>
    %178 = vector.broadcast %177 : vector<8x1xf32> to vector<8x128xf32>
    %179 = arith.mulf %171, %178 : vector<8x128xf32>
    %c0_101 = arith.constant 0 : index
    %c0_102 = arith.constant 0 : index
    %180 = vector.load %arg5[%c0_101, %c0_102] : memref<8x128xf32, #tpu.memory_space<vmem>>, vector<8x128xf32>
    tpu.vector_store %arg5[%c0_101, %c0_102], %179 {strides = array<i32>} : memref<8x128xf32, #tpu.memory_space<vmem>>, vector<8x128xf32>,
    %181 = arith.index_cast %c6_i32 : i32 to index
    %c0_103 = arith.constant 0 : index
    %c0_104 = arith.constant 0 : index
    %182 = vector.load %arg4[%181, %c0_103, %c0_104] : memref<8x8x128xf32, #tpu.memory_space<vmem>>, vector<1x8x128xf32>
    %183 = vector.shape_cast %182 : vector<1x8x128xf32> to vector<8x128xf32>
    %184 = vector.shape_cast %179 : vector<8x128xf32> to vector<1x8x128xf32>
    tpu.vector_store %arg4[%181, %c0_103, %c0_104], %184 {strides = array<i32>} : memref<8x8x128xf32, #tpu.memory_space<vmem>>, vector<1x8x128xf32>,
    %c7_i32 = arith.constant 7 : i32
    %c0_105 = arith.constant 0 : index
    %c0_106 = arith.constant 0 : index
    %185 = vector.load %arg5[%c0_105, %c0_106] : memref<8x128xf32, #tpu.memory_space<vmem>>, vector<8x128xf32>
    %186 = arith.index_cast %c7_i32 : i32 to index
    %c0_107 = arith.constant 0 : index
    %c0_108 = arith.constant 0 : index
    %187 = vector.load %arg3[%186, %c0_107, %c0_108] : memref<8x8x128xf32, #tpu.memory_space<vmem>>, vector<1x8x128xf32>
    %188 = vector.shape_cast %187 : vector<1x8x128xf32> to vector<8x128xf32>
    %c0_109 = arith.constant 0 : index
    %c0_110 = arith.constant 0 : index
    %189 = vector.load %arg1[%c0_109, %c0_110] : memref<128x128xf32, #tpu.memory_space<vmem>>, vector<128x128xf32>
    %cst_111 = arith.constant dense<0.000000e+00> : vector<8x128xf32>
    %190 = tpu.matmul %185, %189, %cst_111 {dimension_numbers = #tpu.dot_dimension_numbers<[1], [0], [0], [1], [0, 0, 1, 1], [], []>} : vector<8x128xf32>, vector<128x128xf32>, vector<8x128xf32> -> vector<8x128xf32>
    %191 = arith.addf %188, %190 : vector<8x128xf32>
    %cst_112 = arith.constant 8.000000e-01 : f32
    %192 = vector.broadcast %cst_112 : f32 to vector<8x128xf32>
    %193 = arith.mulf %192, %185 : vector<8x128xf32>
    %194 = math.tanh %191 : vector<8x128xf32>
    %cst_113 = arith.constant 2.000000e-01 : f32
    %195 = vector.broadcast %cst_113 : f32 to vector<8x128xf32>
    %196 = arith.mulf %195, %194 : vector<8x128xf32>
    %197 = arith.addf %193, %196 : vector<8x128xf32>
    %198 = arith.mulf %197, %197 : vector<8x128xf32>
    %cst_114 = arith.constant dense<0.000000e+00> : vector<8xf32>
    %199 = vector.multi_reduction <add>, %198, %cst_114 [1] : vector<8x128xf32> to vector<8xf32>
    %200 = vector.shape_cast %199 : vector<8xf32> to vector<8x1xf32>
    %cst_115 = arith.constant 9.99999996E-13 : f32
    %201 = vector.broadcast %cst_115 : f32 to vector<8x1xf32>
    %202 = arith.maximumf %200, %201 : vector<8x1xf32>
    %203 = math.rsqrt %202 : vector<8x1xf32>
    %204 = vector.broadcast %203 : vector<8x1xf32> to vector<8x128xf32>
    %205 = arith.mulf %197, %204 : vector<8x128xf32>
    %c0_116 = arith.constant 0 : index
    %c0_117 = arith.constant 0 : index
    %206 = vector.load %arg5[%c0_116, %c0_117] : memref<8x128xf32, #tpu.memory_space<vmem>>, vector<8x128xf32>
    tpu.vector_store %arg5[%c0_116, %c0_117], %205 {strides = array<i32>} : memref<8x128xf32, #tpu.memory_space<vmem>>, vector<8x128xf32>,
    %207 = arith.index_cast %c7_i32 : i32 to index
    %c0_118 = arith.constant 0 : index
    %c0_119 = arith.constant 0 : index
    %208 = vector.load %arg4[%207, %c0_118, %c0_119] : memref<8x8x128xf32, #tpu.memory_space<vmem>>, vector<1x8x128xf32>
    %209 = vector.shape_cast %208 : vector<1x8x128xf32> to vector<8x128xf32>
    %210 = vector.shape_cast %205 : vector<8x128xf32> to vector<1x8x128xf32>
    tpu.vector_store %arg4[%207, %c0_118, %c0_119], %210 {strides = array<i32>} : memref<8x8x128xf32, #tpu.memory_space<vmem>>, vector<1x8x128xf32>,
    %c8_i32 = arith.constant 8 : i32
    return
  }
  func.func @transform_0(%arg0: i32) -> (i32, i32) {
    %c0_i32 = arith.constant 0 : i32
    %c0_i32_0 = arith.constant 0 : i32
    %c0_i32_1 = arith.constant 0 : i32
    return %c0_i32, %c0_i32_0 : i32, i32
  }
  func.func @transform_1(%arg0: i32) -> (i32, i32) {
    %c0_i32 = arith.constant 0 : i32
    %c0_i32_0 = arith.constant 0 : i32
    %c0_i32_1 = arith.constant 0 : i32
    return %c0_i32, %c0_i32_0 : i32, i32
  }
  func.func @transform_2(%arg0: i32) -> (i32, i32, i32) {
    %c0_i32 = arith.constant 0 : i32
    %c0_i32_0 = arith.constant 0 : i32
    %c0_i32_1 = arith.constant 0 : i32
    return %arg0, %c0_i32, %c0_i32_0 : i32, i32, i32
  }
  func.func @transform_3(%arg0: i32) -> (i32, i32, i32) {
    %c0_i32 = arith.constant 0 : i32
    %c0_i32_0 = arith.constant 0 : i32
    %c0_i32_1 = arith.constant 0 : i32
    return %arg0, %c0_i32, %c0_i32_0 : i32, i32, i32
  }
}

</mosaic_0001>

<llo_original>
// kernel: _esn_forward_padded.1
$region0: #{_esn_forward_padded.1}
  #allocation0 [shape = 'u32[]', space=smem, size = 0x4, offset = 0x4, fixed_abs, tag = 'smem constant byte address 0x4 - core index']
  #allocation1 [shape = 'u32[72,128]{1,0:T(1,128)}', space=vmem, size = 0x9000, scoped, tag = 'internal scratch']
  #allocation2 [shape = 'f32[8,128]{1,0:T(8,128)}', space=vmem, size = 0x1000, scoped, tag = 'scratch operand']
  %s0 = inlined_call_operand.hbm [shape: f32[128,128], index: 0, kind: input, shape index: {}]
  %s1 = inlined_call_operand.hbm [shape: f32[8,128], index: 1, kind: input, shape index: {}]
  %s2 = inlined_call_operand.hbm [shape: f32[16,8,128], index: 2, kind: input, shape index: {}]
  %s3 = inlined_call_operand.hbm [shape: f32[16,8,128], index: 3, kind: output, shape index: {}]
  %s4 = sld [smem:[#allocation0]]
  $region61: #{_esn_forward_padded.1} parent=0
    _
  %s6 = ssub.s32 1, %s4
  %s7 = scalar_select 0, %s6, %s4
  $region1: #{_esn_forward_padded.1} parent=0
    #allocation3 [shape = 'u8[65536]{0}', space=vmem, size = 0x10000, scoped, tag = 'input window, operand 0, single buffered']
    #allocation4 [shape = 's32[2]{0}', space=sflag, size = 0x8, scoped, tag = 'scoped memory for _esn_forward_padded.1']
    #allocation5 [shape = 's32[2]{0}', space=sflag, size = 0x8, scoped, tag = 'scoped memory for _esn_forward_padded.1']
    #allocation6 [shape = 'u8[4096]{0}', space=vmem, size = 0x1000, scoped, tag = 'input window, operand 1, single buffered']
    #allocation7 [shape = 's32[1]{0}', space=sflag, size = 0x4, scoped, tag = 'scoped memory for _esn_forward_padded.1']
    #allocation8 [shape = 'u8[65536]{0}', space=vmem, size = 0x10000, scoped, tag = 'input window, operand 2']
    #allocation9 [shape = 'u8[65536]{0}', space=vmem, size = 0x10000, scoped, tag = 'output window, operand 0']
    %8 = vsyncpa [#allocation4], 0
    %9 = vsyncpa [#allocation7], 0
    %10 = vsyncpa [#allocation5], 0
    %s11 = scalar_lea.sflag [#allocation5], 1
    %12 = vsyncpa %s11, 0
    loop: start=0, step=1, limit=4
    $region2: #{_esn_forward_padded.1} parent=1 // loop_pre_header
      _
    $region3: #{_esn_forward_padded.1} parent=1 // loop_header
      %s14 = sphi 0, %s18
      %p15 = scmp.ge.s32.totalorder %s14, 4
      %s22 = sphi 0, %s22
      %s24 = sphi 0, %s22
      %s25 = sphi 0, %s24
      %s39 = sphi 0, %s25
      %s43 = sphi 0, %s43
      %s45 = sphi 0, %s43
      %s46 = sphi 0, %s45
      %s60 = sphi 0, %s46
      %s66 = sphi 0, %s68
      %s69 = sphi 0, %s66
      %s70 = sphi 0, %s69
      %s86 = sphi 0, %s70
      %s92 = sphi 0, %s94
      %s95 = sphi 0, %s92
      %s96 = sphi 0, %s95
      %s112 = sphi 0, %s96
    $region4: #{_esn_forward_padded.1} parent=1 // loop_header_branch
      %17 = sbr.rel (%p15) target = $region8
    $region5: #{_esn_forward_padded.1} parent=1 // loop_body
      %s19 = ssub.s32 %s14, 1
      %s20 = ssub.s32 %s14, 2
      %s21 = sadd.s32 %s14, 1
      %s23 = sadd.s32 %s22, 1
      %p26 = scmp.eq.s32.totalorder %s14, 1
      %p27 = scmp.ne.s32.totalorder %s22, %s24
      %p28 = scmp.eq.s32.totalorder %s14, 0
      %p29 = por %p27, %p28
      %p30 = scmp.ne.s32.totalorder %s22, %s24
      %p31 = scmp.eq.s32.totalorder %s19, 1
      %p32 = por %p30, %p31
      %p33 = scmp.ne.s32.totalorder %s24, %s25
      %p34 = scmp.eq.s32.totalorder %s19, 0
      %p35 = por %p33, %p34
      %p36 = scmp.ne.s32.totalorder %s24, %s25
      %p37 = scmp.eq.s32.totalorder %s20, 1
      %p38 = por %p36, %p37
      %p40 = scmp.ne.s32.totalorder %s25, %s39
      %p41 = scmp.eq.s32.totalorder %s20, 0
      %p42 = por %p40, %p41
      %s44 = sadd.s32 %s43, 1
      %p47 = scmp.eq.s32.totalorder %s14, 1
      %p48 = scmp.ne.s32.totalorder %s43, %s45
      %p49 = scmp.eq.s32.totalorder %s14, 0
      %p50 = por %p48, %p49
      %p51 = scmp.ne.s32.totalorder %s43, %s45
      %p52 = scmp.eq.s32.totalorder %s19, 1
      %p53 = por %p51, %p52
      %p54 = scmp.ne.s32.totalorder %s45, %s46
      %p55 = scmp.eq.s32.totalorder %s19, 0
      %p56 = por %p54, %p55
      %p57 = scmp.ne.s32.totalorder %s45, %s46
      %p58 = scmp.eq.s32.totalorder %s20, 1
      %p59 = por %p57, %p58
      %p61 = scmp.ne.s32.totalorder %s46, %s60
      %p62 = scmp.eq.s32.totalorder %s20, 0
      %p63 = por %p61, %p62
      %s64 = ssub.s32 %s14, %s21
      %p65 = scmp.eq.s32.totalorder %s64, 0
      %s67 = sadd.s32 %s66, 1
      %s68 = scalar_select %p65, %s66, %s67
      %p71 = pneg %p65
      %p72 = scmp.eq.s32.totalorder %s14, 1
      %p73 = por %p71, %p72
      %p74 = scmp.ne.s32.totalorder %s66, %s69
      %p75 = scmp.eq.s32.totalorder %s14, 0
      %p76 = por %p74, %p75
      %p77 = scmp.ne.s32.totalorder %s66, %s69
      %p78 = scmp.eq.s32.totalorder %s19, 1
      %p79 = por %p77, %p78
      %p80 = scmp.ne.s32.totalorder %s69, %s70
      %p81 = scmp.eq.s32.totalorder %s19, 0
      %p82 = por %p80, %p81
      %p83 = scmp.ne.s32.totalorder %s69, %s70
      %p84 = scmp.eq.s32.totalorder %s20, 1
      %p85 = por %p83, %p84
      %p87 = scmp.ne.s32.totalorder %s70, %s86
      %p88 = scmp.eq.s32.totalorder %s20, 0
      %p89 = por %p87, %p88
      %s90 = ssub.s32 %s14, %s21
      %p91 = scmp.eq.s32.totalorder %s90, 0
      %s93 = sadd.s32 %s92, 1
      %s94 = scalar_select %p91, %s92, %s93
      %p97 = pneg %p91
      %p98 = scmp.eq.s32.totalorder %s14, 1
      %p99 = por %p97, %p98
      %p100 = scmp.ne.s32.totalorder %s92, %s95
      %p101 = scmp.eq.s32.totalorder %s14, 0
      %p102 = por %p100, %p101
      %p103 = scmp.ne.s32.totalorder %s92, %s95
      %p104 = scmp.eq.s32.totalorder %s19, 1
      %p105 = por %p103, %p104
      %p106 = scmp.ne.s32.totalorder %s95, %s96
      %p107 = scmp.eq.s32.totalorder %s19, 0
      %p108 = por %p106, %p107
      %p109 = scmp.ne.s32.totalorder %s95, %s96
      %p110 = scmp.eq.s32.totalorder %s20, 1
      %p111 = por %p109, %p110
      %p113 = scmp.ne.s32.totalorder %s96, %s112
      %p114 = scmp.eq.s32.totalorder %s20, 0
      %p115 = por %p113, %p114
      %p116 = scmp.le.s32.totalorder 1, %s14
      %p117 = scmp.lt.s32.totalorder %s14, 3
      %p118 = pnand %p116, %p117
      %p119 = pneg %p118
      // Predicated region
      $region9: #{_esn_forward_padded.1} parent=5 // pred_check
        _
      $region10: #{_esn_forward_padded.1} parent=5 // pred_check_branch
        %121 = sbr.rel (%p118) target = $region12
      $region11: #{_esn_forward_padded.1} parent=5 // pred_region
        %s122 = ssub.s32 %s14, 1
        // Predicated region
        $region13: #{_esn_forward_padded.1} parent=11 // pred_check
          %p123 = pneg %p35
        $region14: #{_esn_forward_padded.1} parent=11 // pred_check_branch
          %125 = sbr.rel (%p123) target = $region16
        $region15: #{_esn_forward_padded.1} parent=11 // pred_region
          %127 = vsyncadd [#allocation4], 0
          %s128 = sshll.u32 %s0, 4
          %s129 = int_to_ptr.hbm [resolvable:$true] %s128
          %s130 = sshll.u32 [#allocation3], 4
          %s131 = int_to_ptr.vmem [resolvable:$true] %s130
          %136 = dma.hbm_to_vmem [thread:$0]  %s129, 2048, %s131, [#allocation4], 128, 128, 8
        $region16: #{_esn_forward_padded.1} parent=11 // pred_fallthru
          _
        // Predicated region
        $region17: #{_esn_forward_padded.1} parent=11 // pred_check
          %p137 = pneg %p56
        $region18: #{_esn_forward_padded.1} parent=11 // pred_check_branch
          %139 = sbr.rel (%p137) target = $region20
        $region19: #{_esn_forward_padded.1} parent=11 // pred_region
          %141 = vsyncadd [#allocation7], 0
          %s143 = sshll.u32 %s1, 4
          %s144 = int_to_ptr.hbm [resolvable:$true] %s143
          %s145 = sshll.u32 [#allocation6], 4
          %s146 = int_to_ptr.vmem [resolvable:$true] %s145
          %148 = dma.hbm_to_vmem [thread:$0]  %s144, 128, %s146, [#allocation7]
        $region20: #{_esn_forward_padded.1} parent=11 // pred_fallthru
          _
      $region12: #{_esn_forward_padded.1} parent=5 // pred_fallthru
        _
      %p149 = scmp.lt.s32.totalorder %s14, 2
      // Predicated region
      $region21: #{_esn_forward_padded.1} parent=5 // pred_check
        %p150 = pneg %p149
      $region22: #{_esn_forward_padded.1} parent=5 // pred_check_branch
        %152 = sbr.rel (%p150) target = $region24
      $region23: #{_esn_forward_padded.1} parent=5 // pred_region
        // Predicated region
        $region25: #{_esn_forward_padded.1} parent=23 // pred_check
          %p153 = pneg %p76
        $region26: #{_esn_forward_padded.1} parent=23 // pred_check_branch
          %155 = sbr.rel (%p153) target = $region28
        $region27: #{_esn_forward_padded.1} parent=23 // pred_region
          %s156 = sand.u32 %s14, 1
          %s157 = scalar_lea.sflag [#allocation4], %s156
          %s158 = sand.u32 %s66, 1
          %s159 = smul.addr %s158, 64
          %s160 = scalar_lea.vmem [#allocation8], %s159
          %s161 = smul.u32 8, %s14
          %163 = vsyncadd %s157, 0
          %s164 = smul.addr %s161, 8
          %s165 = scalar_lea.hbm %s2, %s164
          %s166 = sshll.u32 %s165, 4
          %s167 = int_to_ptr.hbm [resolvable:$true] %s166
          %s168 = sshll.u32 %s160, 4
          %s169 = int_to_ptr.vmem [resolvable:$true] %s168
          %174 = dma.hbm_to_vmem [thread:$0]  %s167, 1024, %s169, %s157, 128, 128, 8
        $region28: #{_esn_forward_padded.1} parent=23 // pred_fallthru
          _
      $region24: #{_esn_forward_padded.1} parent=5 // pred_fallthru
        _
      %p175 = scmp.le.s32.totalorder 1, %s14
      %p176 = scmp.lt.s32.totalorder %s14, 3
      %p177 = pnand %p175, %p176
      %p178 = pneg %p177
      // Predicated region
      $region29: #{_esn_forward_padded.1} parent=5 // pred_check
        _
      $region30: #{_esn_forward_padded.1} parent=5 // pred_check_branch
        %180 = sbr.rel (%p177) target = $region32
      $region31: #{_esn_forward_padded.1} parent=5 // pred_region
        %s181 = ssub.s32 %s14, 1
        // Predicated region
        $region33: #{_esn_forward_padded.1} parent=31 // pred_check
          %p182 = pneg %p35
        $region34: #{_esn_forward_padded.1} parent=31 // pred_check_branch
          %184 = sbr.rel (%p182) target = $region36
        $region35: #{_esn_forward_padded.1} parent=31 // pred_region
          %186 = dma.done [#allocation4], 2048
        $region36: #{_esn_forward_padded.1} parent=31 // pred_fallthru
          _
        // Predicated region
        $region37: #{_esn_forward_padded.1} parent=31 // pred_check
          %p187 = pneg %p56
        $region38: #{_esn_forward_padded.1} parent=31 // pred_check_branch
          %189 = sbr.rel (%p187) target = $region40
        $region39: #{_esn_forward_padded.1} parent=31 // pred_region
          %191 = dma.done [#allocation7], 128
        $region40: #{_esn_forward_padded.1} parent=31 // pred_fallthru
          _
        %s192 = sand.u32 %s19, 1
        %s193 = scalar_lea.sflag [#allocation4], %s192
        %s194 = sand.u32 %s69, 1
        %s195 = smul.addr %s194, 64
        %s196 = scalar_lea.vmem [#allocation8], %s195
        // Predicated region
        $region41: #{_esn_forward_padded.1} parent=31 // pred_check
          %p197 = pneg %p82
        $region42: #{_esn_forward_padded.1} parent=31 // pred_check_branch
          %199 = sbr.rel (%p197) target = $region44
        $region43: #{_esn_forward_padded.1} parent=31 // pred_region
          %201 = dma.done %s193, 1024
        $region44: #{_esn_forward_padded.1} parent=31 // pred_fallthru
          _
        %p202 = pneg %p35
        %p203 = pneg %p32
        %p204 = pneg %p56
        %p205 = pneg %p53
        %s206 = sand.u32 %s19, 1
        %s207 = scalar_lea.sflag [#allocation4], %s206
        %s208 = sand.u32 %s69, 1
        %s209 = smul.addr %s208, 64
        %s210 = scalar_lea.vmem [#allocation8], %s209
        %p211 = pneg %p82
        %p212 = pneg %p79
        %p213 = pneg %p108
        %p214 = pneg %p105
        %s215 = sand.u32 %s95, 1
        %s216 = scalar_lea.sflag [#allocation5], %s215
        %s217 = sand.u32 %s95, 1
        %s218 = smul.addr %s217, 64
        %s219 = scalar_lea.vmem [#allocation9], %s218
        %s220 = smul.u32 8, %s19
        %s221 = smul.u32 8, %s19
        %p222 = scmp.eq.s32.totalorder %s19, 0
        // Predicated region
        $region45: #{_esn_forward_padded.1} parent=31 // pred_check
          %p223 = pneg %p222
        $region46: #{_esn_forward_padded.1} parent=31 // pred_check_branch
          %225 = sbr.rel (%p223) target = $region48
        $region47: #{_esn_forward_padded.1} parent=31 // pred_region
          %v226 = vld [vmem:[#allocation6] sm:$0xff]
          %227 = vst [vmem:[#allocation2] sm:$0xff] %v226
        $region48: #{_esn_forward_padded.1} parent=31 // pred_fallthru
          _
        %v228 = vld [vmem:[#allocation2] sm:$0xff]
        %v229 = vld [vmem:[%s196] sm:$0xff]
        %v230 = vld [vmem:[#allocation3] sm:$0xff]
        %v231 = vld [vmem:[#allocation3 + $0x8] sm:$0xff]
        %v232 = vld [vmem:[#allocation3 + $0x10] sm:$0xff]
        %v233 = vld [vmem:[#allocation3 + $0x18] sm:$0xff]
        %v234 = vld [vmem:[#allocation3 + $0x20] sm:$0xff]
        %v235 = vld [vmem:[#allocation3 + $0x28] sm:$0xff]
        %v236 = vld [vmem:[#allocation3 + $0x30] sm:$0xff]
        %v237 = vld [vmem:[#allocation3 + $0x38] sm:$0xff]
        %v238 = vld [vmem:[#allocation3 + $0x40] sm:$0xff]
        %v239 = vld [vmem:[#allocation3 + $0x48] sm:$0xff]
        %v240 = vld [vmem:[#allocation3 + $0x50] sm:$0xff]
        %v241 = vld [vmem:[#allocation3 + $0x58] sm:$0xff]
        %v242 = vld [vmem:[#allocation3 + $0x60] sm:$0xff]
        %v243 = vld [vmem:[#allocation3 + $0x68] sm:$0xff]
        %v244 = vld [vmem:[#allocation3 + $0x70] sm:$0xff]
        %v245 = vld [vmem:[#allocation3 + $0x78] sm:$0xff]
        %246 = vmatpush.msra.mxu0 %v245
        %247 = vmatpush.msra.mxu0 %v244
        %248 = vmatpush.msra.mxu0 %v243
        %249 = vmatpush.msra.mxu0 %v242
        %250 = vmatpush.msra.mxu0 %v241
        %251 = vmatpush.msra.mxu0 %v240
        %252 = vmatpush.msra.mxu0 %v239
        %253 = vmatpush.msra.mxu0 %v238
        %254 = vmatpush.msra.mxu0 %v237
        %255 = vmatpush.msra.mxu0 %v236
        %256 = vmatpush.msra.mxu0 %v235
        %257 = vmatpush.msra.mxu0 %v234
        %258 = vmatpush.msra.mxu0 %v233
        %259 = vmatpush.msra.mxu0 %v232
        %260 = vmatpush.msra.mxu0 %v231
        %261 = vmatpush.msra.mxu0 %v230
        %262 = vmatmul.f32.gmra.mxu0 %v228
        %v263 = vpop.f32.mrf.mxu0
        %v264 = vadd.f32 0.0, %v263
        %265 = vdwg.mxu0
        %v266 = vadd.f32 %v229, %v264
        %v267 = vmul.f32 %v228, 0.8
        %v268 = vtanh.pop %v266
        %v269 = vmul.f32 %v268, 0.2
        %v270 = vadd.f32 %v267, %v269
        %v271 = vmul.f32 %v270, %v270
        %272 = vadd.xlane.f32.xlu0 %v271
        %v273 = vpop.xlane.xlu0 %272
        %v274 = vmax.f32 %v273, 1e-12
        %v275 = vrsqrt.pop %v274
        %v276 = vmul.f32 %v275, %v274
        %v277 = vmul.f32 %v276, %v275
        %v278 = vmul.f32 0.5, %v277
        %v279 = vsub.f32 1.5, %v278
        %v280 = vmul.f32 %v275, %v279
        %vm281 = vweird.f32 %v274
        %vm282 = vweird.f32 %v275
        %vm283 = vmor %vm281, %vm282
        %v284 = vsel %vm283, %v275, %v280
        %v285 = vmul.f32 %v270, %v284
        %286 = vst [vmem:[#allocation2] sm:$0xff] %v285
        %287 = vst [vmem:[%s219] sm:$0xff] %v285
        %v288 = vld [vmem:[#allocation2] sm:$0xff]
        %s289 = scalar_lea.vmem %s196, 8 [#allocation8]
        %v290 = vld [vmem:[%s289] sm:$0xff]
        %v291 = vld [vmem:[#allocation3] sm:$0xff]
        %v292 = vld [vmem:[#allocation3 + $0x8] sm:$0xff]
        %v293 = vld [vmem:[#allocation3 + $0x10] sm:$0xff]
        %v294 = vld [vmem:[#allocation3 + $0x18] sm:$0xff]
        %v295 = vld [vmem:[#allocation3 + $0x20] sm:$0xff]
        %v296 = vld [vmem:[#allocation3 + $0x28] sm:$0xff]
        %v297 = vld [vmem:[#allocation3 + $0x30] sm:$0xff]
        %v298 = vld [vmem:[#allocation3 + $0x38] sm:$0xff]
        %v299 = vld [vmem:[#allocation3 + $0x40] sm:$0xff]
        %v300 = vld [vmem:[#allocation3 + $0x48] sm:$0xff]
        %v301 = vld [vmem:[#allocation3 + $0x50] sm:$0xff]
        %v302 = vld [vmem:[#allocation3 + $0x58] sm:$0xff]
        %v303 = vld [vmem:[#allocation3 + $0x60] sm:$0xff]
        %v304 = vld [vmem:[#allocation3 + $0x68] sm:$0xff]
        %v305 = vld [vmem:[#allocation3 + $0x70] sm:$0xff]
        %v306 = vld [vmem:[#allocation3 + $0x78] sm:$0xff]
        %307 = vmatpush.msra.mxu0 %v306
        %308 = vmatpush.msra.mxu0 %v305
        %309 = vmatpush.msra.mxu0 %v304
        %310 = vmatpush.msra.mxu0 %v303
        %311 = vmatpush.msra.mxu0 %v302
        %312 = vmatpush.msra.mxu0 %v301
        %313 = vmatpush.msra.mxu0 %v300
        %314 = vmatpush.msra.mxu0 %v299
        %315 = vmatpush.msra.mxu0 %v298
        %316 = vmatpush.msra.mxu0 %v297
        %317 = vmatpush.msra.mxu0 %v296
        %318 = vmatpush.msra.mxu0 %v295
        %319 = vmatpush.msra.mxu0 %v294
        %320 = vmatpush.msra.mxu0 %v293
        %321 = vmatpush.msra.mxu0 %v292
        %322 = vmatpush.msra.mxu0 %v291
        %323 = vmatmul.f32.gmra.mxu0 %v288
        %v324 = vpop.f32.mrf.mxu0
        %v325 = vadd.f32 0.0, %v324
        %326 = vdwg.mxu0
        %v327 = vadd.f32 %v290, %v325
        %v328 = vmul.f32 %v288, 0.8
        %v329 = vtanh.pop %v327
        %v330 = vmul.f32 %v329, 0.2
        %v331 = vadd.f32 %v328, %v330
        %v332 = vmul.f32 %v331, %v331
        %333 = vadd.xlane.f32.xlu0 %v332
        %v334 = vpop.xlane.xlu0 %333
        %v335 = vmax.f32 %v334, 1e-12
        %v336 = vrsqrt.pop %v335
        %v337 = vmul.f32 %v336, %v335
        %v338 = vmul.f32 %v337, %v336
        %v339 = vmul.f32 0.5, %v338
        %v340 = vsub.f32 1.5, %v339
        %v341 = vmul.f32 %v336, %v340
        %vm342 = vweird.f32 %v335
        %vm343 = vweird.f32 %v336
        %vm344 = vmor %vm342, %vm343
        %v345 = vsel %vm344, %v336, %v341
        %v346 = vmul.f32 %v331, %v345
        %347 = vst [vmem:[#allocation2] sm:$0xff] %v346
        %s348 = scalar_lea.vmem %s219, 8 [#allocation9]
        %349 = vst [vmem:[%s348] sm:$0xff] %v346
        %v350 = vld [vmem:[#allocation2] sm:$0xff]
        %s351 = scalar_lea.vmem %s196, 16 [#allocation8]
        %v352 = vld [vmem:[%s351] sm:$0xff]
        %v353 = vld [vmem:[#allocation3] sm:$0xff]
        %v354 = vld [vmem:[#allocation3 + $0x8] sm:$0xff]
        %v355 = vld [vmem:[#allocation3 + $0x10] sm:$0xff]
        %v356 = vld [vmem:[#allocation3 + $0x18] sm:$0xff]
        %v357 = vld [vmem:[#allocation3 + $0x20] sm:$0xff]
        %v358 = vld [vmem:[#allocation3 + $0x28] sm:$0xff]
        %v359 = vld [vmem:[#allocation3 + $0x30] sm:$0xff]
        %v360 = vld [vmem:[#allocation3 + $0x38] sm:$0xff]
        %v361 = vld [vmem:[#allocation3 + $0x40] sm:$0xff]
        %v362 = vld [vmem:[#allocation3 + $0x48] sm:$0xff]
        %v363 = vld [vmem:[#allocation3 + $0x50] sm:$0xff]
        %v364 = vld [vmem:[#allocation3 + $0x58] sm:$0xff]
        %v365 = vld [vmem:[#allocation3 + $0x60] sm:$0xff]
        %v366 = vld [vmem:[#allocation3 + $0x68] sm:$0xff]
        %v367 = vld [vmem:[#allocation3 + $0x70] sm:$0xff]
        %v368 = vld [vmem:[#allocation3 + $0x78] sm:$0xff]
        %369 = vmatpush.msra.mxu0 %v368
        %370 = vmatpush.msra.mxu0 %v367
        %371 = vmatpush.msra.mxu0 %v366
        %372 = vmatpush.msra.mxu0 %v365
        %373 = vmatpush.msra.mxu0 %v364
        %374 = vmatpush.msra.mxu0 %v363
        %375 = vmatpush.msra.mxu0 %v362
        %376 = vmatpush.msra.mxu0 %v361
        %377 = vmatpush.msra.mxu0 %v360
        %378 = vmatpush.msra.mxu0 %v359
        %379 = vmatpush.msra.mxu0 %v358
        %380 = vmatpush.msra.mxu0 %v357
        %381 = vmatpush.msra.mxu0 %v356
        %382 = vmatpush.msra.mxu0 %v355
        %383 = vmatpush.msra.mxu0 %v354
        %384 = vmatpush.msra.mxu0 %v353
        %385 = vmatmul.f32.gmra.mxu0 %v350
        %v386 = vpop.f32.mrf.mxu0
        %v387 = vadd.f32 0.0, %v386
        %388 = vdwg.mxu0
        %v389 = vadd.f32 %v352, %v387
        %v390 = vmul.f32 %v350, 0.8
        %v391 = vtanh.pop %v389
        %v392 = vmul.f32 %v391, 0.2
        %v393 = vadd.f32 %v390, %v392
        %v394 = vmul.f32 %v393, %v393
        %395 = vadd.xlane.f32.xlu0 %v394
        %v396 = vpop.xlane.xlu0 %395
        %v397 = vmax.f32 %v396, 1e-12
        %v398 = vrsqrt.pop %v397
        %v399 = vmul.f32 %v398, %v397
        %v400 = vmul.f32 %v399, %v398
        %v401 = vmul.f32 0.5, %v400
        %v402 = vsub.f32 1.5, %v401
        %v403 = vmul.f32 %v398, %v402
        %vm404 = vweird.f32 %v397
        %vm405 = vweird.f32 %v398
        %vm406 = vmor %vm404, %vm405
        %v407 = vsel %vm406, %v398, %v403
        %v408 = vmul.f32 %v393, %v407
        %409 = vst [vmem:[#allocation2] sm:$0xff] %v408
        %s410 = scalar_lea.vmem %s219, 16 [#allocation9]
        %411 = vst [vmem:[%s410] sm:$0xff] %v408
        %v412 = vld [vmem:[#allocation2] sm:$0xff]
        %s413 = scalar_lea.vmem %s196, 24 [#allocation8]
        %v414 = vld [vmem:[%s413] sm:$0xff]
        %v415 = vld [vmem:[#allocation3] sm:$0xff]
        %v416 = vld [vmem:[#allocation3 + $0x8] sm:$0xff]
        %v417 = vld [vmem:[#allocation3 + $0x10] sm:$0xff]
        %v418 = vld [vmem:[#allocation3 + $0x18] sm:$0xff]
        %v419 = vld [vmem:[#allocation3 + $0x20] sm:$0xff]
        %v420 = vld [vmem:[#allocation3 + $0x28] sm:$0xff]
        %v421 = vld [vmem:[#allocation3 + $0x30] sm:$0xff]
        %v422 = vld [vmem:[#allocation3 + $0x38] sm:$0xff]
        %v423 = vld [vmem:[#allocation3 + $0x40] sm:$0xff]
        %v424 = vld [vmem:[#allocation3 + $0x48] sm:$0xff]
        %v425 = vld [vmem:[#allocation3 + $0x50] sm:$0xff]
        %v426 = vld [vmem:[#allocation3 + $0x58] sm:$0xff]
        %v427 = vld [vmem:[#allocation3 + $0x60] sm:$0xff]
        %v428 = vld [vmem:[#allocation3 + $0x68] sm:$0xff]
        %v429 = vld [vmem:[#allocation3 + $0x70] sm:$0xff]
        %v430 = vld [vmem:[#allocation3 + $0x78] sm:$0xff]
        %431 = vmatpush.msra.mxu0 %v430
        %432 = vmatpush.msra.mxu0 %v429
        %433 = vmatpush.msra.mxu0 %v428
        %434 = vmatpush.msra.mxu0 %v427
        %435 = vmatpush.msra.mxu0 %v426
        %436 = vmatpush.msra.mxu0 %v425
        %437 = vmatpush.msra.mxu0 %v424
        %438 = vmatpush.msra.mxu0 %v423
        %439 = vmatpush.msra.mxu0 %v422
        %440 = vmatpush.msra.mxu0 %v421
        %441 = vmatpush.msra.mxu0 %v420
        %442 = vmatpush.msra.mxu0 %v419
        %443 = vmatpush.msra.mxu0 %v418
        %444 = vmatpush.msra.mxu0 %v417
        %445 = vmatpush.msra.mxu0 %v416
        %446 = vmatpush.msra.mxu0 %v415
        %447 = vmatmul.f32.gmra.mxu0 %v412
        %v448 = vpop.f32.mrf.mxu0
        %v449 = vadd.f32 0.0, %v448
        %450 = vdwg.mxu0
        %v451 = vadd.f32 %v414, %v449
        %v452 = vmul.f32 %v412, 0.8
        %v453 = vtanh.pop %v451
        %v454 = vmul.f32 %v453, 0.2
        %v455 = vadd.f32 %v452, %v454
        %v456 = vmul.f32 %v455, %v455
        %457 = vadd.xlane.f32.xlu0 %v456
        %v458 = vpop.xlane.xlu0 %457
        %v459 = vmax.f32 %v458, 1e-12
        %v460 = vrsqrt.pop %v459
        %v461 = vmul.f32 %v460, %v459
        %v462 = vmul.f32 %v461, %v460
        %v463 = vmul.f32 0.5, %v462
        %v464 = vsub.f32 1.5, %v463
        %v465 = vmul.f32 %v460, %v464
        %vm466 = vweird.f32 %v459
        %vm467 = vweird.f32 %v460
        %vm468 = vmor %vm466, %vm467
        %v469 = vsel %vm468, %v460, %v465
        %v470 = vmul.f32 %v455, %v469
        %471 = vst [vmem:[#allocation2] sm:$0xff] %v470
        %s472 = scalar_lea.vmem %s219, 24 [#allocation9]
        %473 = vst [vmem:[%s472] sm:$0xff] %v470
        %v474 = vld [vmem:[#allocation2] sm:$0xff]
        %s475 = scalar_lea.vmem %s196, 32 [#allocation8]
        %v476 = vld [vmem:[%s475] sm:$0xff]
        %v477 = vld [vmem:[#allocation3] sm:$0xff]
        %v478 = vld [vmem:[#allocation3 + $0x8] sm:$0xff]
        %v479 = vld [vmem:[#allocation3 + $0x10] sm:$0xff]
        %v480 = vld [vmem:[#allocation3 + $0x18] sm:$0xff]
        %v481 = vld [vmem:[#allocation3 + $0x20] sm:$0xff]
        %v482 = vld [vmem:[#allocation3 + $0x28] sm:$0xff]
        %v483 = vld [vmem:[#allocation3 + $0x30] sm:$0xff]
        %v484 = vld [vmem:[#allocation3 + $0x38] sm:$0xff]
        %v485 = vld [vmem:[#allocation3 + $0x40] sm:$0xff]
        %v486 = vld [vmem:[#allocation3 + $0x48] sm:$0xff]
        %v487 = vld [vmem:[#allocation3 + $0x50] sm:$0xff]
        %v488 = vld [vmem:[#allocation3 + $0x58] sm:$0xff]
        %v489 = vld [vmem:[#allocation3 + $0x60] sm:$0xff]
        %v490 = vld [vmem:[#allocation3 + $0x68] sm:$0xff]
        %v491 = vld [vmem:[#allocation3 + $0x70] sm:$0xff]
        %v492 = vld [vmem:[#allocation3 + $0x78] sm:$0xff]
        %493 = vmatpush.msra.mxu0 %v492
        %494 = vmatpush.msra.mxu0 %v491
        %495 = vmatpush.msra.mxu0 %v490
        %496 = vmatpush.msra.mxu0 %v489
        %497 = vmatpush.msra.mxu0 %v488
        %498 = vmatpush.msra.mxu0 %v487
        %499 = vmatpush.msra.mxu0 %v486
        %500 = vmatpush.msra.mxu0 %v485
        %501 = vmatpush.msra.mxu0 %v484
        %502 = vmatpush.msra.mxu0 %v483
        %503 = vmatpush.msra.mxu0 %v482
        %504 = vmatpush.msra.mxu0 %v481
        %505 = vmatpush.msra.mxu0 %v480
        %506 = vmatpush.msra.mxu0 %v479
        %507 = vmatpush.msra.mxu0 %v478
        %508 = vmatpush.msra.mxu0 %v477
        %509 = vmatmul.f32.gmra.mxu0 %v474
        %v510 = vpop.f32.mrf.mxu0
        %v511 = vadd.f32 0.0, %v510
        %512 = vdwg.mxu0
        %v513 = vadd.f32 %v476, %v511
        %v514 = vmul.f32 %v474, 0.8
        %v515 = vtanh.pop %v513
        %v516 = vmul.f32 %v515, 0.2
        %v517 = vadd.f32 %v514, %v516
        %v518 = vmul.f32 %v517, %v517
        %519 = vadd.xlane.f32.xlu0 %v518
        %v520 = vpop.xlane.xlu0 %519
        %v521 = vmax.f32 %v520, 1e-12
        %v522 = vrsqrt.pop %v521
        %v523 = vmul.f32 %v522, %v521
        %v524 = vmul.f32 %v523, %v522
        %v525 = vmul.f32 0.5, %v524
        %v526 = vsub.f32 1.5, %v525
        %v527 = vmul.f32 %v522, %v526
        %vm528 = vweird.f32 %v521
        %vm529 = vweird.f32 %v522
        %vm530 = vmor %vm528, %vm529
        %v531 = vsel %vm530, %v522, %v527
        %v532 = vmul.f32 %v517, %v531
        %533 = vst [vmem:[#allocation2] sm:$0xff] %v532
        %s534 = scalar_lea.vmem %s219, 32 [#allocation9]
        %535 = vst [vmem:[%s534] sm:$0xff] %v532
        %v536 = vld [vmem:[#allocation2] sm:$0xff]
        %s537 = scalar_lea.vmem %s196, 40 [#allocation8]
        %v538 = vld [vmem:[%s537] sm:$0xff]
        %v539 = vld [vmem:[#allocation3] sm:$0xff]
        %v540 = vld [vmem:[#allocation3 + $0x8] sm:$0xff]
        %v541 = vld [vmem:[#allocation3 + $0x10] sm:$0xff]
        %v542 = vld [vmem:[#allocation3 + $0x18] sm:$0xff]
        %v543 = vld [vmem:[#allocation3 + $0x20] sm:$0xff]
        %v544 = vld [vmem:[#allocation3 + $0x28] sm:$0xff]
        %v545 = vld [vmem:[#allocation3 + $0x30] sm:$0xff]
        %v546 = vld [vmem:[#allocation3 + $0x38] sm:$0xff]
        %v547 = vld [vmem:[#allocation3 + $0x40] sm:$0xff]
        %v548 = vld [vmem:[#allocation3 + $0x48] sm:$0xff]
        %v549 = vld [vmem:[#allocation3 + $0x50] sm:$0xff]
        %v550 = vld [vmem:[#allocation3 + $0x58] sm:$0xff]
        %v551 = vld [vmem:[#allocation3 + $0x60] sm:$0xff]
        %v552 = vld [vmem:[#allocation3 + $0x68] sm:$0xff]
        %v553 = vld [vmem:[#allocation3 + $0x70] sm:$0xff]
        %v554 = vld [vmem:[#allocation3 + $0x78] sm:$0xff]
        %555 = vmatpush.msra.mxu0 %v554
        %556 = vmatpush.msra.mxu0 %v553
        %557 = vmatpush.msra.mxu0 %v552
        %558 = vmatpush.msra.mxu0 %v551
        %559 = vmatpush.msra.mxu0 %v550
        %560 = vmatpush.msra.mxu0 %v549
        %561 = vmatpush.msra.mxu0 %v548
        %562 = vmatpush.msra.mxu0 %v547
        %563 = vmatpush.msra.mxu0 %v546
        %564 = vmatpush.msra.mxu0 %v545
        %565 = vmatpush.msra.mxu0 %v544
        %566 = vmatpush.msra.mxu0 %v543
        %567 = vmatpush.msra.mxu0 %v542
        %568 = vmatpush.msra.mxu0 %v541
        %569 = vmatpush.msra.mxu0 %v540
        %570 = vmatpush.msra.mxu0 %v539
        %571 = vmatmul.f32.gmra.mxu0 %v536
        %v572 = vpop.f32.mrf.mxu0
        %v573 = vadd.f32 0.0, %v572
        %574 = vdwg.mxu0
        %v575 = vadd.f32 %v538, %v573
        %v576 = vmul.f32 %v536, 0.8
        %v577 = vtanh.pop %v575
        %v578 = vmul.f32 %v577, 0.2
        %v579 = vadd.f32 %v576, %v578
        %v580 = vmul.f32 %v579, %v579
        %581 = vadd.xlane.f32.xlu0 %v580
        %v582 = vpop.xlane.xlu0 %581
        %v583 = vmax.f32 %v582, 1e-12
        %v584 = vrsqrt.pop %v583
        %v585 = vmul.f32 %v584, %v583
        %v586 = vmul.f32 %v585, %v584
        %v587 = vmul.f32 0.5, %v586
        %v588 = vsub.f32 1.5, %v587
        %v589 = vmul.f32 %v584, %v588
        %vm590 = vweird.f32 %v583
        %vm591 = vweird.f32 %v584
        %vm592 = vmor %vm590, %vm591
        %v593 = vsel %vm592, %v584, %v589
        %v594 = vmul.f32 %v579, %v593
        %595 = vst [vmem:[#allocation2] sm:$0xff] %v594
        %s596 = scalar_lea.vmem %s219, 40 [#allocation9]
        %597 = vst [vmem:[%s596] sm:$0xff] %v594
        %v598 = vld [vmem:[#allocation2] sm:$0xff]
        %s599 = scalar_lea.vmem %s196, 48 [#allocation8]
        %v600 = vld [vmem:[%s599] sm:$0xff]
        %v601 = vld [vmem:[#allocation3] sm:$0xff]
        %v602 = vld [vmem:[#allocation3 + $0x8] sm:$0xff]
        %v603 = vld [vmem:[#allocation3 + $0x10] sm:$0xff]
        %v604 = vld [vmem:[#allocation3 + $0x18] sm:$0xff]
        %v605 = vld [vmem:[#allocation3 + $0x20] sm:$0xff]
        %v606 = vld [vmem:[#allocation3 + $0x28] sm:$0xff]
        %v607 = vld [vmem:[#allocation3 + $0x30] sm:$0xff]
        %v608 = vld [vmem:[#allocation3 + $0x38] sm:$0xff]
        %v609 = vld [vmem:[#allocation3 + $0x40] sm:$0xff]
        %v610 = vld [vmem:[#allocation3 + $0x48] sm:$0xff]
        %v611 = vld [vmem:[#allocation3 + $0x50] sm:$0xff]
        %v612 = vld [vmem:[#allocation3 + $0x58] sm:$0xff]
        %v613 = vld [vmem:[#allocation3 + $0x60] sm:$0xff]
        %v614 = vld [vmem:[#allocation3 + $0x68] sm:$0xff]
        %v615 = vld [vmem:[#allocation3 + $0x70] sm:$0xff]
        %v616 = vld [vmem:[#allocation3 + $0x78] sm:$0xff]
        %617 = vmatpush.msra.mxu0 %v616
        %618 = vmatpush.msra.mxu0 %v615
        %619 = vmatpush.msra.mxu0 %v614
        %620 = vmatpush.msra.mxu0 %v613
        %621 = vmatpush.msra.mxu0 %v612
        %622 = vmatpush.msra.mxu0 %v611
        %623 = vmatpush.msra.mxu0 %v610
        %624 = vmatpush.msra.mxu0 %v609
        %625 = vmatpush.msra.mxu0 %v608
        %626 = vmatpush.msra.mxu0 %v607
        %627 = vmatpush.msra.mxu0 %v606
        %628 = vmatpush.msra.mxu0 %v605
        %629 = vmatpush.msra.mxu0 %v604
        %630 = vmatpush.msra.mxu0 %v603
        %631 = vmatpush.msra.mxu0 %v602
        %632 = vmatpush.msra.mxu0 %v601
        %633 = vmatmul.f32.gmra.mxu0 %v598
        %v634 = vpop.f32.mrf.mxu0
        %v635 = vadd.f32 0.0, %v634
        %636 = vdwg.mxu0
        %v637 = vadd.f32 %v600, %v635
        %v638 = vmul.f32 %v598, 0.8
        %v639 = vtanh.pop %v637
        %v640 = vmul.f32 %v639, 0.2
        %v641 = vadd.f32 %v638, %v640
        %v642 = vmul.f32 %v641, %v641
        %643 = vadd.xlane.f32.xlu0 %v642
        %v644 = vpop.xlane.xlu0 %643
        %v645 = vmax.f32 %v644, 1e-12
        %v646 = vrsqrt.pop %v645
        %v647 = vmul.f32 %v646, %v645
        %v648 = vmul.f32 %v647, %v646
        %v649 = vmul.f32 0.5, %v648
        %v650 = vsub.f32 1.5, %v649
        %v651 = vmul.f32 %v646, %v650
        %vm652 = vweird.f32 %v645
        %vm653 = vweird.f32 %v646
        %vm654 = vmor %vm652, %vm653
        %v655 = vsel %vm654, %v646, %v651
        %v656 = vmul.f32 %v641, %v655
        %657 = vst [vmem:[#allocation2] sm:$0xff] %v656
        %s658 = scalar_lea.vmem %s219, 48 [#allocation9]
        %659 = vst [vmem:[%s658] sm:$0xff] %v656
        %v660 = vld [vmem:[#allocation2] sm:$0xff]
        %s661 = scalar_lea.vmem %s196, 56 [#allocation8]
        %v662 = vld [vmem:[%s661] sm:$0xff]
        %v663 = vld [vmem:[#allocation3] sm:$0xff]
        %v664 = vld [vmem:[#allocation3 + $0x8] sm:$0xff]
        %v665 = vld [vmem:[#allocation3 + $0x10] sm:$0xff]
        %v666 = vld [vmem:[#allocation3 + $0x18] sm:$0xff]
        %v667 = vld [vmem:[#allocation3 + $0x20] sm:$0xff]
        %v668 = vld [vmem:[#allocation3 + $0x28] sm:$0xff]
        %v669 = vld [vmem:[#allocation3 + $0x30] sm:$0xff]
        %v670 = vld [vmem:[#allocation3 + $0x38] sm:$0xff]
        %v671 = vld [vmem:[#allocation3 + $0x40] sm:$0xff]
        %v672 = vld [vmem:[#allocation3 + $0x48] sm:$0xff]
        %v673 = vld [vmem:[#allocation3 + $0x50] sm:$0xff]
        %v674 = vld [vmem:[#allocation3 + $0x58] sm:$0xff]
        %v675 = vld [vmem:[#allocation3 + $0x60] sm:$0xff]
        %v676 = vld [vmem:[#allocation3 + $0x68] sm:$0xff]
        %v677 = vld [vmem:[#allocation3 + $0x70] sm:$0xff]
        %v678 = vld [vmem:[#allocation3 + $0x78] sm:$0xff]
        %679 = vmatpush.msra.mxu0 %v678
        %680 = vmatpush.msra.mxu0 %v677
        %681 = vmatpush.msra.mxu0 %v676
        %682 = vmatpush.msra.mxu0 %v675
        %683 = vmatpush.msra.mxu0 %v674
        %684 = vmatpush.msra.mxu0 %v673
        %685 = vmatpush.msra.mxu0 %v672
        %686 = vmatpush.msra.mxu0 %v671
        %687 = vmatpush.msra.mxu0 %v670
        %688 = vmatpush.msra.mxu0 %v669
        %689 = vmatpush.msra.mxu0 %v668
        %690 = vmatpush.msra.mxu0 %v667
        %691 = vmatpush.msra.mxu0 %v666
        %692 = vmatpush.msra.mxu0 %v665
        %693 = vmatpush.msra.mxu0 %v664
        %694 = vmatpush.msra.mxu0 %v663
        %695 = vmatmul.f32.gmra.mxu0 %v660
        %v696 = vpop.f32.mrf.mxu0
        %v697 = vadd.f32 0.0, %v696
        %698 = vdwg.mxu0
        %v699 = vadd.f32 %v662, %v697
        %v700 = vmul.f32 %v660, 0.8
        %v701 = vtanh.pop %v699
        %v702 = vmul.f32 %v701, 0.2
        %v703 = vadd.f32 %v700, %v702
        %v704 = vmul.f32 %v703, %v703
        %705 = vadd.xlane.f32.xlu0 %v704
        %v706 = vpop.xlane.xlu0 %705
        %v707 = vmax.f32 %v706, 1e-12
        %v708 = vrsqrt.pop %v707
        %v709 = vmul.f32 %v708, %v707
        %v710 = vmul.f32 %v709, %v708
        %v711 = vmul.f32 0.5, %v710
        %v712 = vsub.f32 1.5, %v711
        %v713 = vmul.f32 %v708, %v712
        %vm714 = vweird.f32 %v707
        %vm715 = vweird.f32 %v708
        %vm716 = vmor %vm714, %vm715
        %v717 = vsel %vm716, %v708, %v713
        %v718 = vmul.f32 %v703, %v717
        %719 = vst [vmem:[#allocation2] sm:$0xff] %v718
        %s720 = scalar_lea.vmem %s219, 56 [#allocation9]
        %721 = vst [vmem:[%s720] sm:$0xff] %v718
        %s722 = sand.u32 %s95, 1
        %s723 = scalar_lea.sflag [#allocation5], %s722
        %s724 = sand.u32 %s95, 1
        %s725 = smul.addr %s724, 64
        %s726 = scalar_lea.vmem [#allocation9], %s725
        // Predicated region
        $region49: #{_esn_forward_padded.1} parent=31 // pred_check
          %p727 = pneg %p105
        $region50: #{_esn_forward_padded.1} parent=31 // pred_check_branch
          %729 = sbr.rel (%p727) target = $region52
        $region51: #{_esn_forward_padded.1} parent=31 // pred_region
          %s730 = smul.u32 8, %s19
          %732 = vsyncadd %s723, 0
          %s733 = smul.addr %s730, 8
          %s734 = scalar_lea.hbm %s3, %s733
          %s735 = sshll.u32 %s726, 4
          %s736 = int_to_ptr.vmem [resolvable:$true] %s735
          %s737 = sshll.u32 %s734, 4
          %s738 = int_to_ptr.hbm [resolvable:$true] %s737
          %743 = dma.vmem_to_hbm [thread:$0]  %s736, 1024, %s738, %s723, 128, 128, 8
        $region52: #{_esn_forward_padded.1} parent=31 // pred_fallthru
          _
      $region32: #{_esn_forward_padded.1} parent=5 // pred_fallthru
        _
      %p744 = scmp.le.s32.totalorder 2, %s14
      // Predicated region
      $region53: #{_esn_forward_padded.1} parent=5 // pred_check
        %p745 = pneg %p744
      $region54: #{_esn_forward_padded.1} parent=5 // pred_check_branch
        %747 = sbr.rel (%p745) target = $region56
      $region55: #{_esn_forward_padded.1} parent=5 // pred_region
        %s748 = ssub.s32 %s14, 2
        // Predicated region
        $region57: #{_esn_forward_padded.1} parent=55 // pred_check
          %p749 = pneg %p111
        $region58: #{_esn_forward_padded.1} parent=55 // pred_check_branch
          %751 = sbr.rel (%p749) target = $region60
        $region59: #{_esn_forward_padded.1} parent=55 // pred_region
          %s752 = sand.u32 %s96, 1
          %s753 = scalar_lea.sflag [#allocation5], %s752
          %s754 = sand.u32 %s96, 1
          %s755 = smul.addr %s754, 64
          %s756 = scalar_lea.vmem [#allocation9], %s755
          %758 = dma.done %s753, 1024
        $region60: #{_esn_forward_padded.1} parent=55 // pred_fallthru
          _
      $region56: #{_esn_forward_padded.1} parent=5 // pred_fallthru
        _
    $region6: #{_esn_forward_padded.1} parent=1 // loop_footer
      %s18 = sadd.s32 1, %s14
    $region7: #{_esn_forward_padded.1} parent=1 // loop_footer_branch
      %13 = sbr.rel target = $region3
    $region8: #{_esn_forward_padded.1} parent=1 // loop_exit
      _
    %759 = vsyncpa [#allocation4], 1
    %s760 = scalar_lea.sflag [#allocation4], 1
    %761 = vsyncpa %s760, 1
    %762 = vsyncpa [#allocation7], 1
    %763 = vsyncpa [#allocation5], 1
    %s764 = scalar_lea.sflag [#allocation5], 1
    %765 = vsyncpa %s764, 1

</llo_original>
